<compile_context>
chip_gen: v6e
topology: v6e:2x2x1
jax: 0.10.0
libtpu: 0.0.40
codegen_flags: <defaults>
</compile_context>

<pallas_src>
import jax
import jax.numpy as jnp
from jax.experimental import pallas as pl
from jax.experimental.pallas import tpu as pltpu


def _gmf_kernel(ue_ref, ie_ref, bias_ref, w_ref, scal_ref, out_ref):
    # ue_ref, ie_ref : [H, TB]  VMEM  (hidden on sublanes, batch on lanes,
    #                                  native table dtype; upcast here)
    # bias_ref       : [1, TB]  VMEM  (user_bias + item_bias, lane-dense, f32)
    # w_ref          : [H, 1]   VMEM  (prediction weights for interaction part)
    # scal_ref       : [2]      SMEM  (scal_ref[0] = weight for bias feature,
    #                                  scal_ref[1] = linear-layer bias)
    # out_ref        : [1, TB]  VMEM  (lane-dense output row)
    w_bias_feat = scal_ref[0]                       # read SMEM scalars once
    lin_bias = scal_ref[1]

    ue = ue_ref[...].astype(jnp.float32)
    ie = ie_ref[...].astype(jnp.float32)
    # Fused mul + weighted sublane reduce (VPU + XLU); no materialized temp.
    dot = jnp.sum(ue * ie * w_ref[...], axis=0, keepdims=True)   # [1, TB]
    out_ref[...] = dot + bias_ref[...].astype(jnp.float32) * w_bias_feat + lin_bias


def _choose_tile_b(B, H, itemsize, vmem_limit_bytes):
    """Pick the batch (lane) tile.

    Targets ~8 MiB of embedding DMA per grid step (amortizes the ~0.35us
    per-step overhead), capped so 2 streams x 2 pipeline buffers fit in half
    of the scoped-VMEM limit, rounded to a multiple of 128 lanes, and shrunk
    so the grid has >= 2 steps when the batch allows (v7x megacore +
    prefetch/writeback overlap).
    """
    bytes_per_lane = 2 * H * itemsize                       # two embedding streams
    tb_target = (8 << 20) // max(bytes_per_lane, 1)         # ~8 MiB per step
    tb_cap = (vmem_limit_bytes // 2) // max(2 * bytes_per_lane, 1)  # x2 buffers
    tb = max(128, (min(tb_target, tb_cap) // 128) * 128)

    b128 = pl.cdiv(B, 128) * 128                            # lane-aligned batch extent
    if b128 >= 256:                                         # keep >= 2 grid steps
        tb = min(tb, max(128, ((b128 // 2) // 128) * 128))
    return min(tb, b128)


def biased_gmf_forward(user_ids, item_ids, params):
    """Computes BiasedGMF(user_ids, item_ids) -> [B] float32."""
    E_u = params["user_embedding"]     # [U, H]
    E_i = params["item_embedding"]     # [I, H]
    B_u = params["user_bias"]          # [U, 1]
    B_i = params["item_bias"]          # [I, 1]
    w = params["pred_weight"]          # [H+1]
    b = params["pred_bias"]            # scalar

    B = user_ids.shape[0]
    H = E_u.shape[1]

    # --- glue: gathers in native dtype, [H, B] layout, bias pre-added -------
    # allow_input_fusion lets XLA fuse these producers into the pallas_call
    # operands (no materialized HBM intermediates when jitted).
    ue_t = E_u[user_ids].T                                        # [H, B] native dtype
    ie_t = E_i[item_ids].T                                        # [H, B] native dtype
    bias_sum = (B_u[user_ids, 0] + B_i[item_ids, 0]).astype(jnp.float32)[None, :]

    w_int = w[:H].reshape(H, 1).astype(jnp.float32)               # [H, 1]
    scal = jnp.stack([w[H], b]).astype(jnp.float32)               # [2] -> SMEM

    # --- per-generation tile / VMEM budget -----------------------------------
    try:
        phys_vmem = pltpu.get_tpu_info().vmem_capacity_bytes      # 64 MiB on v7x
    except Exception:
        phys_vmem = 64 << 20
    vmem_limit = int(min(phys_vmem // 2, 64 << 20))               # leave headroom

    itemsize = jnp.dtype(E_u.dtype).itemsize
    tb = _choose_tile_b(B, H, itemsize, vmem_limit)

    grid = (pl.cdiv(B, tb),)   # ragged last block handled by Pallas masking
    out = pl.pallas_call(
        _gmf_kernel,
        out_shape=jax.ShapeDtypeStruct((1, B), jnp.float32),
        grid=grid,
        in_specs=[
            # TODO(synk): if a profile shows exposed DMA at step boundaries,
            # add pipeline_mode=pl.Buffered(3) on the two embedding streams.
            pl.BlockSpec((H, tb), lambda i: (0, i)),
            pl.BlockSpec((H, tb), lambda i: (0, i)),
            pl.BlockSpec((1, tb), lambda i: (0, i)),
            pl.BlockSpec((H, 1), lambda i: (0, 0)),
            pl.BlockSpec(memory_space=pltpu.SMEM),
        ],
        out_specs=pl.BlockSpec((1, tb), lambda i: (0, i)),
        compiler_params=pltpu.CompilerParams(
            dimension_semantics=("parallel",),
            vmem_limit_bytes=vmem_limit,
            allow_input_fusion=[True, True, True, False, False],
        ),
    )(ue_t, ie_t, bias_sum, w_int, scal)
    return out[0]                                                  # .view(-1)


def init_params(key, num_users, num_items, hidden_size):
    k1, k2, k3, k4 = jax.random.split(key, 4)
    # nn.Embedding default init ~ N(0,1); nn.Linear default ~ U(-1/sqrt(fan_in), ...)
    bound = 1.0 / jnp.sqrt(hidden_size + 1.0)
    return {
        "user_embedding": jax.random.normal(k1, (num_users, hidden_size), jnp.float32),
        "item_embedding": jax.random.normal(k2, (num_items, hidden_size), jnp.float32),
        "user_bias": jnp.zeros((num_users, 1), jnp.float32),        # .fill_(0.0)
        "item_bias": jnp.zeros((num_items, 1), jnp.float32),        # .fill_(0.0)
        "pred_weight": jax.random.uniform(
            k3, (hidden_size + 1,), jnp.float32, -bound, bound),
        "pred_bias": jax.random.uniform(k4, (), jnp.float32, -bound, bound),
    }


def _reference(user_ids, item_ids, params):
    ue = params["user_embedding"][user_ids]
    ie = params["item_embedding"][item_ids]
    ub = params["user_bias"][user_ids][:, 0]
    ib = params["item_bias"][item_ids][:, 0]
    inter = ue * ie
    feats = jnp.concatenate([inter, (ub + ib)[:, None]], axis=1)
    return feats @ params["pred_weight"] + params["pred_bias"]


if __name__ == "__main__":
    key = jax.random.PRNGKey(0)
    num_users, num_items, hidden_size = 64, 128, 32
    batch = 8

    params = init_params(key, num_users, num_items, hidden_size)
    ku, ki = jax.random.split(jax.random.PRNGKey(1))
    user_ids = jax.random.randint(ku, (batch,), 0, num_users)
    item_ids = jax.random.randint(ki, (batch,), 0, num_items)

    fwd = jax.jit(biased_gmf_forward)   # jit so gathers fuse into the pallas_call
    pred = jax.block_until_ready(fwd(user_ids, item_ids, params))

    ref = _reference(user_ids, item_ids, params)
    assert pred.shape == (batch,), pred.shape
    assert jnp.allclose(pred, ref, atol=1e-5, rtol=1e-5), (pred, ref)
    print("KERNEL_OK")
</pallas_src>

<mosaic_0001>
module attributes {stable_mosaic.version = 11 : i64} {
  func.func @_gmf_kernel(%arg0: i32, %arg1: memref<32x128xf32, #tpu.memory_space<vmem>>, %arg2: memref<32x128xf32, #tpu.memory_space<vmem>>, %arg3: memref<1x128xf32, #tpu.memory_space<vmem>>, %arg4: memref<32x1xf32, #tpu.memory_space<vmem>>, %arg5: memref<2xf32, #tpu.memory_space<smem>>, %arg6: memref<1x128xf32, #tpu.memory_space<vmem>>) attributes {dimension_semantics = [#tpu.dimension_semantics<parallel>], iteration_bounds = array<i64: 1>, scalar_prefetch = 0 : i64, scratch_operands = 0 : i64, tpu.core_type = #tpu.core_type<tc>, window_params = [{transform_indices = @transform_0, window_bounds = array<i64: 32, 128>}, {transform_indices = @transform_1, window_bounds = array<i64: 32, 128>}, {transform_indices = @transform_2, window_bounds = array<i64: 1, 128>}, {pipeline_mode = #tpu.pipeline_mode<synchronous>, transform_indices = @transform_3, window_bounds = array<i64: 32, 1>}, {transform_indices = @transform_4, window_bounds = array<i64: 2>}, {transform_indices = @transform_5, window_bounds = array<i64: 1, 128>}]} {
    %c0 = arith.constant 0 : index
    %0 = memref.load %arg5[%c0] : memref<2xf32, #tpu.memory_space<smem>>
    %c1 = arith.constant 1 : index
    %1 = memref.load %arg5[%c1] : memref<2xf32, #tpu.memory_space<smem>>
    %c0_0 = arith.constant 0 : index
    %c0_1 = arith.constant 0 : index
    %2 = vector.load %arg1[%c0_0, %c0_1] : memref<32x128xf32, #tpu.memory_space<vmem>>, vector<32x128xf32>
    %c0_2 = arith.constant 0 : index
    %c0_3 = arith.constant 0 : index
    %3 = vector.load %arg2[%c0_2, %c0_3] : memref<32x128xf32, #tpu.memory_space<vmem>>, vector<32x128xf32>
    %4 = arith.mulf %2, %3 : vector<32x128xf32>
    %c0_4 = arith.constant 0 : index
    %c0_5 = arith.constant 0 : index
    %5 = vector.load %arg4[%c0_4, %c0_5] : memref<32x1xf32, #tpu.memory_space<vmem>>, vector<32x1xf32>
    %6 = vector.broadcast %5 : vector<32x1xf32> to vector<32x128xf32>
    %7 = arith.mulf %4, %6 : vector<32x128xf32>
    %cst = arith.constant dense<0.000000e+00> : vector<128xf32>
    %8 = vector.multi_reduction <add>, %7, %cst [0] : vector<32x128xf32> to vector<128xf32>
    %9 = vector.shape_cast %8 : vector<128xf32> to vector<1x128xf32>
    %c0_6 = arith.constant 0 : index
    %c0_7 = arith.constant 0 : index
    %10 = vector.load %arg3[%c0_6, %c0_7] : memref<1x128xf32, #tpu.memory_space<vmem>>, vector<1x128xf32>
    %11 = vector.broadcast %0 : f32 to vector<1x128xf32>
    %12 = arith.mulf %10, %11 : vector<1x128xf32>
    %13 = arith.addf %9, %12 : vector<1x128xf32>
    %14 = vector.broadcast %1 : f32 to vector<1x128xf32>
    %15 = arith.addf %13, %14 : vector<1x128xf32>
    %c0_8 = arith.constant 0 : index
    %c0_9 = arith.constant 0 : index
    %16 = vector.load %arg6[%c0_8, %c0_9] : memref<1x128xf32, #tpu.memory_space<vmem>>, vector<1x128xf32>
    tpu.vector_store %arg6[%c0_8, %c0_9], %15 {strides = array<i32>} : memref<1x128xf32, #tpu.memory_space<vmem>>, vector<1x128xf32>,
    return
  }
  func.func @transform_0(%arg0: i32) -> (i32, i32) {
    %c0_i32 = arith.constant 0 : i32
    %c0_i32_0 = arith.constant 0 : i32
    return %c0_i32, %arg0 : i32, i32
  }
  func.func @transform_1(%arg0: i32) -> (i32, i32) {
    %c0_i32 = arith.constant 0 : i32
    %c0_i32_0 = arith.constant 0 : i32
    return %c0_i32, %arg0 : i32, i32
  }
  func.func @transform_2(%arg0: i32) -> (i32, i32) {
    %c0_i32 = arith.constant 0 : i32
    %c0_i32_0 = arith.constant 0 : i32
    return %c0_i32, %arg0 : i32, i32
  }
  func.func @transform_3(%arg0: i32) -> (i32, i32) {
    %c0_i32 = arith.constant 0 : i32
    %c0_i32_0 = arith.constant 0 : i32
    %c0_i32_1 = arith.constant 0 : i32
    return %c0_i32, %c0_i32_0 : i32, i32
  }
  func.func @transform_4(%arg0: i32) -> i32 {
    %c0_i32 = arith.constant 0 : i32
    %c0_i32_0 = arith.constant 0 : i32
    return %c0_i32 : i32
  }
  func.func @transform_5(%arg0: i32) -> (i32, i32) {
    %c0_i32 = arith.constant 0 : i32
    %c0_i32_0 = arith.constant 0 : i32
    return %c0_i32, %arg0 : i32, i32
  }
}

</mosaic_0001>

<llo_original>
// kernel: biased_gmf_forward.2
$region0: #{biased_gmf_forward.2}
  #allocation0 [shape = 'u32[]', space=smem, size = 0x4, offset = 0x4, fixed_abs, tag = 'smem constant byte address 0x4 - core index']
  #allocation1 [shape = 'u32[144,128]{1,0:T(1,128)}', space=vmem, size = 0x12000, scoped, tag = 'internal scratch']
  %s0 = inlined_call_operand.vmem [shape: f32[32,1], index: 0, kind: input, shape index: {}]
  %s1 = inlined_call_operand.vmem [shape: f32[2], index: 1, kind: input, shape index: {}]
  %s2 = inlined_call_operand.vmem [shape: f32[8,32], index: 2, kind: input, shape index: {}]
  %s3 = inlined_call_operand.vmem [shape: f32[8,32], index: 3, kind: input, shape index: {}]
  %s4 = inlined_call_operand.vmem [shape: f32[8], index: 4, kind: input, shape index: {}]
  %s5 = inlined_call_operand.vmem [shape: f32[8], index: 5, kind: input, shape index: {}]
  %s6 = inlined_call_operand.hbm [shape: f32[1,8], index: 6, kind: output, shape index: {}]
  %s7 = sld [smem:[#allocation0]]
  $region38: #{biased_gmf_forward.2} parent=0
    _
  %s9 = ssub.s32 1, %s7
  %s10 = scalar_select 0, %s9, %s7
  $region1: #{biased_gmf_forward.2} parent=0
    #allocation2 [shape = 'u8[512]{0}', space=smem, size = 0x200, scoped, tag = 'input window, operand 4, single buffered']
    #allocation3 [shape = 's32[1]{0}', space=sflag, size = 0x4, scoped, tag = 'scoped memory for biased_gmf_forward.2']
    #allocation4 [shape = 's32[1]{0}', space=sflag, size = 0x4, scoped, tag = 'scoped memory for biased_gmf_forward.2']
    #allocation5 [shape = 'u8[512]{0}', space=vmem, size = 0x400, scoped, tag = 'output window, operand 0, single buffered']
    #allocation6 [shape = 'u8[16384]{0}', space=vmem, size = 0x4000, dematerialized = true, scoped, tag = 'FusionAdapter Buffer %fusion.2 = f32[32,8]{1,0:T(8,128)} fusion(%param_3.21), kind=kLoop, calls=%fused_computation.6.clone, metadata={op_name="jit(biased_gmf_forward)/transpose" stack_frame_id=7}']
    #allocation7 [shape = 'u8[16384]{0}', space=vmem, size = 0x4000, dematerialized = true, scoped, tag = 'FusionAdapter Buffer %fusion.1 = f32[32,8]{1,0:T(8,128)} fusion(%param_2.33), kind=kLoop, calls=%fused_computation.5.clone, metadata={op_name="jit(biased_gmf_forward)/transpose" stack_frame_id=8}']
    #allocation8 [shape = 'u8[512]{0}', space=vmem, size = 0x400, dematerialized = true, scoped, tag = 'FusionAdapter Buffer %fusion.3 = f32[1,8]{1,0:T(1,128)} fusion(%param_4.4, %param_5), kind=kLoop, calls=%fused_computation.12.clone, metadata={op_name="jit(biased_gmf_forward)/add" stack_frame_id=9}']
    %11 = vsyncpa [#allocation4], 0
    %12 = vsyncpa [#allocation3], 0
    // Predicated region
    $region2: #{biased_gmf_forward.2} parent=1 // pred_check
      _
    $region3: #{biased_gmf_forward.2} parent=1 // pred_check_branch
      %14 = sbr.rel (0) target = $region5
    $region4: #{biased_gmf_forward.2} parent=1 // pred_region
      _
    $region5: #{biased_gmf_forward.2} parent=1 // pred_fallthru
      _
    // Predicated region
    $region6: #{biased_gmf_forward.2} parent=1 // pred_check
      _
    $region7: #{biased_gmf_forward.2} parent=1 // pred_check_branch
      %16 = sbr.rel (0) target = $region9
    $region8: #{biased_gmf_forward.2} parent=1 // pred_region
      _
    $region9: #{biased_gmf_forward.2} parent=1 // pred_fallthru
      _
    // Predicated region
    $region10: #{biased_gmf_forward.2} parent=1 // pred_check
      _
    $region11: #{biased_gmf_forward.2} parent=1 // pred_check_branch
      %18 = sbr.rel (0) target = $region13
    $region12: #{biased_gmf_forward.2} parent=1 // pred_region
      _
    $region13: #{biased_gmf_forward.2} parent=1 // pred_fallthru
      _
    // Predicated region
    $region14: #{biased_gmf_forward.2} parent=1 // pred_check
      _
    $region15: #{biased_gmf_forward.2} parent=1 // pred_check_branch
      %20 = sbr.rel (0) target = $region17
    $region16: #{biased_gmf_forward.2} parent=1 // pred_region
      _
    $region17: #{biased_gmf_forward.2} parent=1 // pred_fallthru
      _
    // Predicated region
    $region18: #{biased_gmf_forward.2} parent=1 // pred_check
      _
    $region19: #{biased_gmf_forward.2} parent=1 // pred_check_branch
      %22 = sbr.rel (0) target = $region21
    $region20: #{biased_gmf_forward.2} parent=1 // pred_region
      _
    $region21: #{biased_gmf_forward.2} parent=1 // pred_fallthru
      _
    // Predicated region
    $region22: #{biased_gmf_forward.2} parent=1 // pred_check
      _
    $region23: #{biased_gmf_forward.2} parent=1 // pred_check_branch
      %24 = sbr.rel (0) target = $region25
    $region24: #{biased_gmf_forward.2} parent=1 // pred_region
      %s26 = ssub.s32 16, 16
      %27 = vsyncadd [#allocation4], %s26
      %s29 = sshll.u32 %s1, 4
      %s30 = int_to_ptr.vmem [resolvable:$true] %s29
      %32 = dma.vmem_to_smem %s30, 16, [#allocation2], [#allocation4]
    $region25: #{biased_gmf_forward.2} parent=1 // pred_fallthru
      _
    // Predicated region
    $region26: #{biased_gmf_forward.2} parent=1 // pred_check
      _
    $region27: #{biased_gmf_forward.2} parent=1 // pred_check_branch
      %34 = sbr.rel (0) target = $region29
    $region28: #{biased_gmf_forward.2} parent=1 // pred_region
      %35 = dma.done [#allocation4], 16
    $region29: #{biased_gmf_forward.2} parent=1 // pred_fallthru
      _
    %36 = sfence
    %v37 = vld [vmem:[%s3] sm:$0xff]
    %s39 = ssub.s32 256, 1
    %40 = vst [vmem:[#allocation6] sm:%s39] %v37
    %s41 = scalar_lea.vmem %s3, 8
    %v42 = vld [vmem:[%s41] sm:$0xff]
    %s43 = scalar_lea.vmem [#allocation6], 8
    %s45 = ssub.s32 256, 1
    %46 = vst [vmem:[%s43] sm:%s45] %v42
    %s47 = scalar_lea.vmem %s3, 16
    %v48 = vld [vmem:[%s47] sm:$0xff]
    %s49 = scalar_lea.vmem [#allocation6], 16
    %s51 = ssub.s32 256, 1
    %52 = vst [vmem:[%s49] sm:%s51] %v48
    %s53 = scalar_lea.vmem %s3, 24
    %v54 = vld [vmem:[%s53] sm:$0xff]
    %s55 = scalar_lea.vmem [#allocation6], 24
    %s57 = ssub.s32 256, 1
    %58 = vst [vmem:[%s55] sm:%s57] %v54
    %v59 = vld [vmem:[%s2] sm:$0xff]
    %s61 = ssub.s32 256, 1
    %62 = vst [vmem:[#allocation7] sm:%s61] %v59
    %s63 = scalar_lea.vmem %s2, 8
    %v64 = vld [vmem:[%s63] sm:$0xff]
    %s65 = scalar_lea.vmem [#allocation7], 8
    %s67 = ssub.s32 256, 1
    %68 = vst [vmem:[%s65] sm:%s67] %v64
    %s69 = scalar_lea.vmem %s2, 16
    %v70 = vld [vmem:[%s69] sm:$0xff]
    %s71 = scalar_lea.vmem [#allocation7], 16
    %s73 = ssub.s32 256, 1
    %74 = vst [vmem:[%s71] sm:%s73] %v70
    %s75 = scalar_lea.vmem %s2, 24
    %v76 = vld [vmem:[%s75] sm:$0xff]
    %s77 = scalar_lea.vmem [#allocation7], 24
    %s79 = ssub.s32 256, 1
    %80 = vst [vmem:[%s77] sm:%s79] %v76
    %v81 = vld [vmem:[%s4] sm:$0x1]
    %v82 = vld [vmem:[%s5] sm:$0x1]
    %83 = xla_tuple %v81, %v82
    %84 = xla_tuple %83
    %v85 = vadd.f32 %v81, %v82
    %86 = xla_tuple %v85
    %s88 = ssub.s32 2, 1
    %89 = vst [vmem:[#allocation8] sm:%s88] %v85
    %s90 = sld [smem:[#allocation2]]
    %s91 = sld [smem:[#allocation2 + $0x1]]
    %v92 = vld [vmem:[#allocation6] sm:$0xff]
    %v93 = vld [vmem:[#allocation6 + $0x8] sm:$0xff]
    %v94 = vld [vmem:[#allocation6 + $0x10] sm:$0xff]
    %v95 = vld [vmem:[#allocation6 + $0x18] sm:$0xff]
    %v96 = vld [vmem:[#allocation7] sm:$0xff]
    %v97 = vld [vmem:[#allocation7 + $0x8] sm:$0xff]
    %v98 = vld [vmem:[#allocation7 + $0x10] sm:$0xff]
    %v99 = vld [vmem:[#allocation7 + $0x18] sm:$0xff]
    %v100 = vmul.f32 %v92, %v96
    %v101 = vmul.f32 %v93, %v97
    %v102 = vmul.f32 %v94, %v98
    %v103 = vmul.f32 %v95, %v99
    %v104 = vld [vmem:[%s0] sm:$0xff]
    %v105 = vld [vmem:[%s0 + $0x8] sm:$0xff]
    %v106 = vld [vmem:[%s0 + $0x10] sm:$0xff]
    %v107 = vld [vmem:[%s0 + $0x18] sm:$0xff]
    %109 = vset.pattern.permute.xlu0 0
    %110 = vperm.xlu0 %109, %v104
    %v111 = vpop.permute.xlu0 %110
    %114 = vset.pattern.permute.xlu0 0
    %115 = vperm.xlu0 %114, %v105
    %v116 = vpop.permute.xlu0 %115
    %119 = vset.pattern.permute.xlu0 0
    %120 = vperm.xlu0 %119, %v106
    %v121 = vpop.permute.xlu0 %120
    %124 = vset.pattern.permute.xlu0 0
    %125 = vperm.xlu0 %124, %v107
    %v126 = vpop.permute.xlu0 %125
    %v128 = vmul.f32 %v100, %v111
    %v129 = vmul.f32 %v101, %v116
    %v130 = vmul.f32 %v102, %v121
    %v131 = vmul.f32 %v103, %v126
    %v132 = vadd.f32 %v128, %v129
    %v133 = vadd.f32 %v132, %v130
    %v134 = vadd.f32 %v133, %v131
    %v135 = vrot.slane %v134, 4
    %v136 = vadd.f32 %v134, %v135
    %v137 = vrot.slane %v136, 2
    %v138 = vadd.f32 %v136, %v137
    %v139 = vrot.slane %v138, 1
    %v140 = vadd.f32 %v138, %v139
    %v141 = vld [vmem:[#allocation8] sm:$0x1]
    %v142 = vstv %s90
    %v143 = vmul.f32 %v141, %v142
    %v144 = vadd.f32 %v140, %v143
    %v145 = vstv %s91
    %v146 = vadd.f32 %v144, %v145
    %147 = vst [vmem:[#allocation5] sm:$0x1] %v146
    // Predicated region
    $region30: #{biased_gmf_forward.2} parent=1 // pred_check
      _
    $region31: #{biased_gmf_forward.2} parent=1 // pred_check_branch
      %149 = sbr.rel (0) target = $region33
    $region32: #{biased_gmf_forward.2} parent=1 // pred_region
      %s151 = ssub.s32 16, 16
      %152 = vsyncadd [#allocation3], %s151
      %s154 = sshll.u32 [#allocation5], 4
      %s155 = int_to_ptr.vmem [resolvable:$true] %s154
      %157 = dma.vmem_to_hbm [thread:$0]  %s155, 16, %s6, [#allocation3]
    $region33: #{biased_gmf_forward.2} parent=1 // pred_fallthru
      _
    // Predicated region
    $region34: #{biased_gmf_forward.2} parent=1 // pred_check
      _
    $region35: #{biased_gmf_forward.2} parent=1 // pred_check_branch
      %159 = sbr.rel (0) target = $region37
    $region36: #{biased_gmf_forward.2} parent=1 // pred_region
      %160 = dma.done [#allocation3], 16
    $region37: #{biased_gmf_forward.2} parent=1 // pred_fallthru
      _
    %161 = vsyncpa [#allocation3], 1
    %162 = vsyncpa [#allocation4], 1

</llo_original>
